<compile_context>
chip_gen: v6e
topology: v6e:2x2x1
jax: 0.10.0
libtpu: 0.0.40
codegen_flags: <defaults>
</compile_context>

<pallas_src>
import jax
import jax.numpy as jnp
from jax.experimental import pallas as pl
from jax.experimental.pallas import tpu as pltpu


# Above this channel count the per-pixel C-term VPU FMA conv becomes
# VALU-bound (2*C vector ops per loaded element), so route to the MXU path.
_SMALL_C_MAX = 16


def _vmem_limit_bytes():
    """Generation-gated scoped-VMEM budget: ~half of physical VMEM.
    v5e/v6e (128 MiB parts) -> 64 MiB; v7x (64 MiB part) -> 32 MiB."""
    try:
        cap = pltpu.get_tpu_info().vmem_capacity_bytes
    except Exception:  # e.g. interpret mode on a non-TPU backend
        cap = 64 * 1024 * 1024
    return min(cap // 2, 64 * 1024 * 1024)


# ----------------------------------------------------------------------------
# Small-C path: NCHW-direct, VPU conv, exact f32 math.  (This is the path the
# demo shape (N=2, C=4, H=W=16) exercises.)
# ----------------------------------------------------------------------------

def _small_c_kernel(x_ref, w_ref, o_ref):
    """x_ref: (C, HT, W) one batch / H-tile of the NCHW input (VMEM).
    w_ref: (C, C) conv weight (C_out, C_in) in SMEM (scalar reads).
    o_ref: (C, HT) pooled output tile."""
    x = x_ref[...]                                  # (C, HT, W), input dtype
    c = x.shape[0]

    # 1x1 conv: y[co] = sum_ci W[co, ci] * x[ci].  Unrolled scalar*vector FMAs
    # (C^2 statements, C <= _SMALL_C_MAX) — exact f32 on the VPU, no MXU
    # padding, no channels-last relayout.  Scalars come straight from SMEM.
    rows = []
    for co in range(c):
        acc = w_ref[co, 0] * x[0]
        for ci in range(1, c):
            acc = acc + w_ref[co, ci] * x[ci]
        rows.append(acc)                            # (HT, W) f32
    y = jnp.stack(rows, axis=0)                     # (C, HT, W) f32

    # Softmax over W (lane axis) + fused pooling; attn never materialized.
    m = jnp.max(y, axis=-1, keepdims=True)          # (C, HT, 1)
    e = jnp.exp(y - m)                              # (C, HT, W) f32
    s = jnp.sum(e, axis=-1)                         # (C, HT)
    num = jnp.sum(x * e, axis=-1)                   # (C, HT), promotes to f32
    # Exact divide (not the approximate EUP reciprocal): keeps this path
    # bit-faithful to the f32 PyTorch module.
    o_ref[...] = (num / s).astype(o_ref.dtype)


def _pick_h_tile(c, h, w, in_dtype, vmem_limit):
    """H tile: HT == H or a multiple-of-128 divisor of H (keeps the (C, HT)
    output block and the (HT, W) input block legal under the (8,128) rule);
    largest candidate whose working set fits the VMEM budget."""
    in_bytes = jnp.dtype(in_dtype).itemsize
    lane_w = -(-w // 128) * 128                     # lane-padded W
    cands = [h] + [d for d in range(128, h, 128) if h % d == 0]
    # per H-row footprint: 2x pipelined input block + ~3 live f32 temporaries.
    per_h = c * lane_w * (2 * in_bytes + 3 * 4)
    budget = max(vmem_limit - (2 << 20), 4 << 20)
    fitting = [d for d in cands if d * per_h <= budget]
    return max(fitting) if fitting else min(cands)


def _small_c_path(x, conv_weight):
    n, c, h, w = x.shape
    vmem_limit = _vmem_limit_bytes()
    ht = _pick_h_tile(c, h, w, x.dtype, vmem_limit)

    return pl.pallas_call(
        _small_c_kernel,
        out_shape=jax.ShapeDtypeStruct((n, c, h), x.dtype),
        grid_spec=pltpu.PrefetchScalarGridSpec(
            num_scalar_prefetch=0,
            grid=(n, h // ht),
            in_specs=[
                # Block the ORIGINAL NCHW array — the layout change rides the
                # kernel's own DMA; no standalone XLA transpose of x.
                pl.BlockSpec((pl.Squeezed(), c, ht, w),
                             lambda i, j: (i, 0, j, 0)),
                # Tiny (C, C) weight lives in SMEM: scalar reads feed the
                # unrolled FMAs directly, no VMEM/vreg footprint.
                pl.BlockSpec(memory_space=pltpu.MemorySpace.SMEM),
            ],
            out_specs=pl.BlockSpec((pl.Squeezed(), c, ht),
                                   lambda i, j: (i, 0, j)),
        ),
        compiler_params=pltpu.CompilerParams(
            dimension_semantics=("parallel", "parallel"),
            vmem_limit_bytes=vmem_limit,
        ),
    )(x, conv_weight)


# ----------------------------------------------------------------------------
# Large-C path: channels-last rows, single MXU matmul per block.
# ----------------------------------------------------------------------------

def _mxu_rows_kernel(x_ref, wt_ref, o_ref):
    """x_ref: (RB, W, C) channels-last rows; wt_ref: (C, C) = conv_w.T (bf16);
    o_ref: (RB, C) pooled rows."""
    x = x_ref[...]                                  # (RB, W, C), input dtype
    rb, w, c = x.shape

    # 1x1 conv == per-pixel channel mixing: one MXU matmul over all RB*W
    # pixels.  Weight was pre-cast in the wrapper; only the x tile is cast
    # here.  f32 accumulation via preferred_element_type.
    y = jnp.dot(
        x.reshape(rb * w, c).astype(wt_ref.dtype),
        wt_ref[...],
        preferred_element_type=jnp.float32,
    ).reshape(rb, w, c)                             # (RB, W, C) f32

    # Softmax over W (axis=1, sublane reduction), all f32.
    m = jnp.max(y, axis=1, keepdims=True)           # (RB, 1, C)
    e = jnp.exp(y - m)                              # (RB, W, C)
    s = jnp.sum(e, axis=1)                          # (RB, C)

    # Fused normalization; x promotes elementwise (no full-block f32 copy).
    num = jnp.sum(x * e, axis=1)                    # (RB, C) f32
    inv_s = pl.reciprocal(s, approx=True)           # EUP rcp, one per (row, ch)
    o_ref[...] = (num * inv_s).astype(o_ref.dtype)


def _pick_row_block(rows, w, c, in_dtype, vmem_limit):
    """Row tile for the MXU path: multiple of 8 (legal (RB, C) output block),
    VMEM budget counting the double-buffered input block, ~4 live f32
    temporaries and the single-buffered bf16 weight, and >= 4 grid steps when
    rows allow (2 TensorCores x double buffering on v7x)."""
    in_bytes = jnp.dtype(in_dtype).itemsize
    lane_c = -(-c // 128) * 128
    sub_w = -(-w // 8) * 8
    per_row = sub_w * lane_c * (2 * in_bytes + 4 * 4)
    weight_bytes = lane_c * lane_c * 2              # bf16, single buffer
    budget = max(vmem_limit - weight_bytes - (2 << 20), 2 << 20)
    cap = max(8, budget // per_row)
    cap = min(cap, max(rows // 4, 8))               # >= 4 grid steps if possible
    rb = max(8, (cap // 8) * 8)
    rows_padded = -(-rows // rb) * rb
    return rb, rows_padded


def _mxu_path(x, conv_weight):
    n, c, h, w = x.shape
    rows = n * h
    vmem_limit = _vmem_limit_bytes()

    # TODO(synk): this standalone NCHW -> (N*H, W, C) transpose is an extra HBM
    # round trip of x on a bandwidth-bound op; it should be fused into the
    # producer (or the producer should emit channels-last activations).
    x_rows = jnp.transpose(x, (0, 2, 3, 1)).reshape(rows, w, c)
    # Pre-cast the weight ONCE in the wrapper (bf16 MXU inputs, f32 accumulate):
    # no per-grid-step C^2 cast, and half the resident weight footprint.
    w_t = conv_weight.T.astype(jnp.bfloat16)

    rb, rows_padded = _pick_row_block(rows, w, c, x.dtype, vmem_limit)
    if rows_padded != rows:
        # Zero rows are harmless (uniform softmax of zero logits over zero
        # inputs) and are sliced off below.
        x_rows = jnp.pad(x_rows, ((0, rows_padded - rows), (0, 0), (0, 0)))

    out_rows = pl.pallas_call(
        _mxu_rows_kernel,
        out_shape=jax.ShapeDtypeStruct((rows_padded, c), x.dtype),
        grid_spec=pltpu.PrefetchScalarGridSpec(
            num_scalar_prefetch=0,
            grid=(rows_padded // rb,),
            in_specs=[
                pl.BlockSpec((rb, w, c), lambda i: (i, 0, 0)),
                # Constant block index across the grid -> single-buffered.
                pl.BlockSpec((c, c), lambda i: (0, 0),
                             pipeline_mode=pl.Buffered(1)),
            ],
            out_specs=pl.BlockSpec((rb, c), lambda i: (i, 0)),
        ),
        compiler_params=pltpu.CompilerParams(
            dimension_semantics=("parallel",),
            vmem_limit_bytes=vmem_limit,
        ),
    )(x_rows, w_t)

    out_rows = out_rows[:rows]
    return jnp.transpose(out_rows.reshape(n, h, c), (0, 2, 1))


# ----------------------------------------------------------------------------
# Public entry point + reference
# ----------------------------------------------------------------------------

def attentive_pooling_2d(x, conv_weight):
    """x: (N, C, H, W); conv_weight: (C_out, C_in) dense matrix of the
    Conv2d(C, C, 1, bias=False) weight.  Returns (N, C, H)."""
    _, c, _, _ = x.shape
    if c <= _SMALL_C_MAX:
        return _small_c_path(x, conv_weight)
    return _mxu_path(x, conv_weight)


def attentive_pooling_2d_ref(x, conv_weight):
    # Pure-JAX reference mirroring the PyTorch module.  precision=HIGHEST keeps
    # the conv in true f32 (like PyTorch), so the exact-f32 small-C kernel path
    # matches it to ~1e-6.
    y = jnp.einsum("oc,nchw->nohw", conv_weight, x,
                   precision=jax.lax.Precision.HIGHEST)
    attn = jax.nn.softmax(y, axis=-1)
    return jnp.sum(x * attn, axis=-1)


if __name__ == "__main__":
    # Small shapes consistent with the module: batch=2, channels=4, spatial=16.
    N, C, H, W = 2, 4, 16, 16
    key = jax.random.PRNGKey(0)
    kx, kw = jax.random.split(key)

    x = jax.random.normal(kx, (N, C, H, W), dtype=jnp.float32)
    # Deterministic synthetic Conv2d(C, C, 1, bias=False) weight (C_out, C_in).
    fan_in = C  # 1x1 kernel
    bound = 1.0 / (fan_in ** 0.5)
    conv_weight = jax.random.uniform(
        kw, (C, C), dtype=jnp.float32, minval=-bound, maxval=bound)

    out = jax.block_until_ready(attentive_pooling_2d(x, conv_weight))
    ref = attentive_pooling_2d_ref(x, conv_weight)

    assert out.shape == (N, C, H)
    assert jnp.allclose(out, ref, rtol=1e-3, atol=1e-3), "mismatch vs reference"

    print("KERNEL_OK")
</pallas_src>

<mosaic_0001>
module attributes {stable_mosaic.version = 11 : i64} {
  func.func @_small_c_kernel(%arg0: i32, %arg1: i32, %arg2: memref<1x4x16x16xf32, #tpu.memory_space<vmem>>, %arg3: memref<4x4xf32, #tpu.memory_space<smem>>, %arg4: memref<1x4x16xf32, #tpu.memory_space<vmem>>) attributes {dimension_semantics = [#tpu.dimension_semantics<parallel>, #tpu.dimension_semantics<parallel>], iteration_bounds = array<i64: 2, 1>, scalar_prefetch = 0 : i64, scratch_operands = 0 : i64, tpu.core_type = #tpu.core_type<tc>, window_params = [{transform_indices = @transform_0, window_bounds = array<i64: 1, 4, 16, 16>}, {transform_indices = @transform_1, window_bounds = array<i64: 4, 4>}, {transform_indices = @transform_2, window_bounds = array<i64: 1, 4, 16>}]} {
    %c0 = arith.constant 0 : index
    %c0_0 = arith.constant 0 : index
    %c0_1 = arith.constant 0 : index
    %c0_2 = arith.constant 0 : index
    %0 = vector.load %arg2[%c0, %c0_0, %c0_1, %c0_2] : memref<1x4x16x16xf32, #tpu.memory_space<vmem>>, vector<1x4x16x16xf32>
    %1 = vector.shape_cast %0 : vector<1x4x16x16xf32> to vector<4x16x16xf32>
    %c0_3 = arith.constant 0 : index
    %c0_4 = arith.constant 0 : index
    %2 = memref.load %arg3[%c0_3, %c0_4] : memref<4x4xf32, #tpu.memory_space<smem>>
    %3 = vector.extract_strided_slice %1 {offsets = [0, 0, 0], sizes = [1, 16, 16], strides = [1, 1, 1]} : vector<4x16x16xf32> to vector<1x16x16xf32>
    %4 = vector.shape_cast %3 : vector<1x16x16xf32> to vector<16x16xf32>
    %5 = vector.broadcast %2 : f32 to vector<16x16xf32>
    %6 = arith.mulf %5, %4 : vector<16x16xf32>
    %c0_5 = arith.constant 0 : index
    %c1 = arith.constant 1 : index
    %7 = memref.load %arg3[%c0_5, %c1] : memref<4x4xf32, #tpu.memory_space<smem>>
    %8 = vector.extract_strided_slice %1 {offsets = [1, 0, 0], sizes = [1, 16, 16], strides = [1, 1, 1]} : vector<4x16x16xf32> to vector<1x16x16xf32>
    %9 = vector.shape_cast %8 : vector<1x16x16xf32> to vector<16x16xf32>
    %10 = vector.broadcast %7 : f32 to vector<16x16xf32>
    %11 = arith.mulf %10, %9 : vector<16x16xf32>
    %12 = arith.addf %6, %11 : vector<16x16xf32>
    %c0_6 = arith.constant 0 : index
    %c2 = arith.constant 2 : index
    %13 = memref.load %arg3[%c0_6, %c2] : memref<4x4xf32, #tpu.memory_space<smem>>
    %14 = vector.extract_strided_slice %1 {offsets = [2, 0, 0], sizes = [1, 16, 16], strides = [1, 1, 1]} : vector<4x16x16xf32> to vector<1x16x16xf32>
    %15 = vector.shape_cast %14 : vector<1x16x16xf32> to vector<16x16xf32>
    %16 = vector.broadcast %13 : f32 to vector<16x16xf32>
    %17 = arith.mulf %16, %15 : vector<16x16xf32>
    %18 = arith.addf %12, %17 : vector<16x16xf32>
    %c0_7 = arith.constant 0 : index
    %c3 = arith.constant 3 : index
    %19 = memref.load %arg3[%c0_7, %c3] : memref<4x4xf32, #tpu.memory_space<smem>>
    %20 = vector.extract_strided_slice %1 {offsets = [3, 0, 0], sizes = [1, 16, 16], strides = [1, 1, 1]} : vector<4x16x16xf32> to vector<1x16x16xf32>
    %21 = vector.shape_cast %20 : vector<1x16x16xf32> to vector<16x16xf32>
    %22 = vector.broadcast %19 : f32 to vector<16x16xf32>
    %23 = arith.mulf %22, %21 : vector<16x16xf32>
    %24 = arith.addf %18, %23 : vector<16x16xf32>
    %c1_8 = arith.constant 1 : index
    %c0_9 = arith.constant 0 : index
    %25 = memref.load %arg3[%c1_8, %c0_9] : memref<4x4xf32, #tpu.memory_space<smem>>
    %26 = vector.extract_strided_slice %1 {offsets = [0, 0, 0], sizes = [1, 16, 16], strides = [1, 1, 1]} : vector<4x16x16xf32> to vector<1x16x16xf32>
    %27 = vector.shape_cast %26 : vector<1x16x16xf32> to vector<16x16xf32>
    %28 = vector.broadcast %25 : f32 to vector<16x16xf32>
    %29 = arith.mulf %28, %27 : vector<16x16xf32>
    %c1_10 = arith.constant 1 : index
    %c1_11 = arith.constant 1 : index
    %30 = memref.load %arg3[%c1_10, %c1_11] : memref<4x4xf32, #tpu.memory_space<smem>>
    %31 = vector.extract_strided_slice %1 {offsets = [1, 0, 0], sizes = [1, 16, 16], strides = [1, 1, 1]} : vector<4x16x16xf32> to vector<1x16x16xf32>
    %32 = vector.shape_cast %31 : vector<1x16x16xf32> to vector<16x16xf32>
    %33 = vector.broadcast %30 : f32 to vector<16x16xf32>
    %34 = arith.mulf %33, %32 : vector<16x16xf32>
    %35 = arith.addf %29, %34 : vector<16x16xf32>
    %c1_12 = arith.constant 1 : index
    %c2_13 = arith.constant 2 : index
    %36 = memref.load %arg3[%c1_12, %c2_13] : memref<4x4xf32, #tpu.memory_space<smem>>
    %37 = vector.extract_strided_slice %1 {offsets = [2, 0, 0], sizes = [1, 16, 16], strides = [1, 1, 1]} : vector<4x16x16xf32> to vector<1x16x16xf32>
    %38 = vector.shape_cast %37 : vector<1x16x16xf32> to vector<16x16xf32>
    %39 = vector.broadcast %36 : f32 to vector<16x16xf32>
    %40 = arith.mulf %39, %38 : vector<16x16xf32>
    %41 = arith.addf %35, %40 : vector<16x16xf32>
    %c1_14 = arith.constant 1 : index
    %c3_15 = arith.constant 3 : index
    %42 = memref.load %arg3[%c1_14, %c3_15] : memref<4x4xf32, #tpu.memory_space<smem>>
    %43 = vector.extract_strided_slice %1 {offsets = [3, 0, 0], sizes = [1, 16, 16], strides = [1, 1, 1]} : vector<4x16x16xf32> to vector<1x16x16xf32>
    %44 = vector.shape_cast %43 : vector<1x16x16xf32> to vector<16x16xf32>
    %45 = vector.broadcast %42 : f32 to vector<16x16xf32>
    %46 = arith.mulf %45, %44 : vector<16x16xf32>
    %47 = arith.addf %41, %46 : vector<16x16xf32>
    %c2_16 = arith.constant 2 : index
    %c0_17 = arith.constant 0 : index
    %48 = memref.load %arg3[%c2_16, %c0_17] : memref<4x4xf32, #tpu.memory_space<smem>>
    %49 = vector.extract_strided_slice %1 {offsets = [0, 0, 0], sizes = [1, 16, 16], strides = [1, 1, 1]} : vector<4x16x16xf32> to vector<1x16x16xf32>
    %50 = vector.shape_cast %49 : vector<1x16x16xf32> to vector<16x16xf32>
    %51 = vector.broadcast %48 : f32 to vector<16x16xf32>
    %52 = arith.mulf %51, %50 : vector<16x16xf32>
    %c2_18 = arith.constant 2 : index
    %c1_19 = arith.constant 1 : index
    %53 = memref.load %arg3[%c2_18, %c1_19] : memref<4x4xf32, #tpu.memory_space<smem>>
    %54 = vector.extract_strided_slice %1 {offsets = [1, 0, 0], sizes = [1, 16, 16], strides = [1, 1, 1]} : vector<4x16x16xf32> to vector<1x16x16xf32>
    %55 = vector.shape_cast %54 : vector<1x16x16xf32> to vector<16x16xf32>
    %56 = vector.broadcast %53 : f32 to vector<16x16xf32>
    %57 = arith.mulf %56, %55 : vector<16x16xf32>
    %58 = arith.addf %52, %57 : vector<16x16xf32>
    %c2_20 = arith.constant 2 : index
    %c2_21 = arith.constant 2 : index
    %59 = memref.load %arg3[%c2_20, %c2_21] : memref<4x4xf32, #tpu.memory_space<smem>>
    %60 = vector.extract_strided_slice %1 {offsets = [2, 0, 0], sizes = [1, 16, 16], strides = [1, 1, 1]} : vector<4x16x16xf32> to vector<1x16x16xf32>
    %61 = vector.shape_cast %60 : vector<1x16x16xf32> to vector<16x16xf32>
    %62 = vector.broadcast %59 : f32 to vector<16x16xf32>
    %63 = arith.mulf %62, %61 : vector<16x16xf32>
    %64 = arith.addf %58, %63 : vector<16x16xf32>
    %c2_22 = arith.constant 2 : index
    %c3_23 = arith.constant 3 : index
    %65 = memref.load %arg3[%c2_22, %c3_23] : memref<4x4xf32, #tpu.memory_space<smem>>
    %66 = vector.extract_strided_slice %1 {offsets = [3, 0, 0], sizes = [1, 16, 16], strides = [1, 1, 1]} : vector<4x16x16xf32> to vector<1x16x16xf32>
    %67 = vector.shape_cast %66 : vector<1x16x16xf32> to vector<16x16xf32>
    %68 = vector.broadcast %65 : f32 to vector<16x16xf32>
    %69 = arith.mulf %68, %67 : vector<16x16xf32>
    %70 = arith.addf %64, %69 : vector<16x16xf32>
    %c3_24 = arith.constant 3 : index
    %c0_25 = arith.constant 0 : index
    %71 = memref.load %arg3[%c3_24, %c0_25] : memref<4x4xf32, #tpu.memory_space<smem>>
    %72 = vector.extract_strided_slice %1 {offsets = [0, 0, 0], sizes = [1, 16, 16], strides = [1, 1, 1]} : vector<4x16x16xf32> to vector<1x16x16xf32>
    %73 = vector.shape_cast %72 : vector<1x16x16xf32> to vector<16x16xf32>
    %74 = vector.broadcast %71 : f32 to vector<16x16xf32>
    %75 = arith.mulf %74, %73 : vector<16x16xf32>
    %c3_26 = arith.constant 3 : index
    %c1_27 = arith.constant 1 : index
    %76 = memref.load %arg3[%c3_26, %c1_27] : memref<4x4xf32, #tpu.memory_space<smem>>
    %77 = vector.extract_strided_slice %1 {offsets = [1, 0, 0], sizes = [1, 16, 16], strides = [1, 1, 1]} : vector<4x16x16xf32> to vector<1x16x16xf32>
    %78 = vector.shape_cast %77 : vector<1x16x16xf32> to vector<16x16xf32>
    %79 = vector.broadcast %76 : f32 to vector<16x16xf32>
    %80 = arith.mulf %79, %78 : vector<16x16xf32>
    %81 = arith.addf %75, %80 : vector<16x16xf32>
    %c3_28 = arith.constant 3 : index
    %c2_29 = arith.constant 2 : index
    %82 = memref.load %arg3[%c3_28, %c2_29] : memref<4x4xf32, #tpu.memory_space<smem>>
    %83 = vector.extract_strided_slice %1 {offsets = [2, 0, 0], sizes = [1, 16, 16], strides = [1, 1, 1]} : vector<4x16x16xf32> to vector<1x16x16xf32>
    %84 = vector.shape_cast %83 : vector<1x16x16xf32> to vector<16x16xf32>
    %85 = vector.broadcast %82 : f32 to vector<16x16xf32>
    %86 = arith.mulf %85, %84 : vector<16x16xf32>
    %87 = arith.addf %81, %86 : vector<16x16xf32>
    %c3_30 = arith.constant 3 : index
    %c3_31 = arith.constant 3 : index
    %88 = memref.load %arg3[%c3_30, %c3_31] : memref<4x4xf32, #tpu.memory_space<smem>>
    %89 = vector.extract_strided_slice %1 {offsets = [3, 0, 0], sizes = [1, 16, 16], strides = [1, 1, 1]} : vector<4x16x16xf32> to vector<1x16x16xf32>
    %90 = vector.shape_cast %89 : vector<1x16x16xf32> to vector<16x16xf32>
    %91 = vector.broadcast %88 : f32 to vector<16x16xf32>
    %92 = arith.mulf %91, %90 : vector<16x16xf32>
    %93 = arith.addf %87, %92 : vector<16x16xf32>
    %94 = vector.shape_cast %24 : vector<16x16xf32> to vector<1x16x16xf32>
    %95 = vector.shape_cast %47 : vector<16x16xf32> to vector<1x16x16xf32>
    %96 = vector.shape_cast %70 : vector<16x16xf32> to vector<1x16x16xf32>
    %97 = vector.shape_cast %93 : vector<16x16xf32> to vector<1x16x16xf32>
    %98 = tpu.concatenate %94, %95, %96, %97 in 0 : vector<1x16x16xf32>, vector<1x16x16xf32>, vector<1x16x16xf32>, vector<1x16x16xf32> -> vector<4x16x16xf32>
    %cst = arith.constant dense<0xFF800000> : vector<4x16xf32>
    %99 = vector.multi_reduction <maximumf>, %98, %cst [2] : vector<4x16x16xf32> to vector<4x16xf32>
    %100 = vector.shape_cast %99 : vector<4x16xf32> to vector<4x16x1xf32>
    %101 = vector.broadcast %100 : vector<4x16x1xf32> to vector<4x16x16xf32>
    %102 = arith.subf %98, %101 : vector<4x16x16xf32>
    %103 = math.exp %102 : vector<4x16x16xf32>
    %cst_32 = arith.constant dense<0.000000e+00> : vector<4x16xf32>
    %104 = vector.multi_reduction <add>, %103, %cst_32 [2] : vector<4x16x16xf32> to vector<4x16xf32>
    %105 = arith.mulf %1, %103 : vector<4x16x16xf32>
    %cst_33 = arith.constant dense<0.000000e+00> : vector<4x16xf32>
    %106 = vector.multi_reduction <add>, %105, %cst_33 [2] : vector<4x16x16xf32> to vector<4x16xf32>
    %107 = arith.divf %106, %104 : vector<4x16xf32>
    %c0_34 = arith.constant 0 : index
    %c0_35 = arith.constant 0 : index
    %c0_36 = arith.constant 0 : index
    %108 = vector.load %arg4[%c0_34, %c0_35, %c0_36] : memref<1x4x16xf32, #tpu.memory_space<vmem>>, vector<1x4x16xf32>
    %109 = vector.shape_cast %108 : vector<1x4x16xf32> to vector<4x16xf32>
    %110 = vector.shape_cast %107 : vector<4x16xf32> to vector<1x4x16xf32>
    tpu.vector_store %arg4[%c0_34, %c0_35, %c0_36], %110 {strides = array<i32>} : memref<1x4x16xf32, #tpu.memory_space<vmem>>, vector<1x4x16xf32>,
    return
  }
  func.func @transform_0(%arg0: i32, %arg1: i32) -> (i32, i32, i32, i32) {
    %c0_i32 = arith.constant 0 : i32
    %c0_i32_0 = arith.constant 0 : i32
    %c0_i32_1 = arith.constant 0 : i32
    return %arg0, %c0_i32, %arg1, %c0_i32_0 : i32, i32, i32, i32
  }
  func.func @transform_1(%arg0: i32, %arg1: i32) -> (i32, i32) {
    %c0_i32 = arith.constant 0 : i32
    %c0_i32_0 = arith.constant 0 : i32
    %c0_i32_1 = arith.constant 0 : i32
    return %c0_i32, %c0_i32_0 : i32, i32
  }
  func.func @transform_2(%arg0: i32, %arg1: i32) -> (i32, i32, i32) {
    %c0_i32 = arith.constant 0 : i32
    %c0_i32_0 = arith.constant 0 : i32
    return %arg0, %c0_i32, %arg1 : i32, i32, i32
  }
}

</mosaic_0001>

<llo_original>
// kernel: tpu_custom_call.1
$region0: #{tpu_custom_call.1}
  #allocation0 [shape = 'u32[]', space=smem, size = 0x4, offset = 0x4, fixed_abs, tag = 'smem constant byte address 0x4 - core index']
  #allocation1 [shape = 'u32[144,128]{1,0:T(1,128)}', space=vmem, size = 0x12000, scoped, tag = 'internal scratch']
  %s0 = inlined_call_operand.hbm [shape: f32[2,4,16,16], index: 0, kind: input, shape index: {}]
  %s1 = inlined_call_operand.hbm [shape: f32[4,4], index: 1, kind: input, shape index: {}]
  %s2 = inlined_call_operand.hbm [shape: f32[2,4,16], index: 2, kind: output, shape index: {}]
  %s3 = sld [smem:[#allocation0]]
  $region49: #{tpu_custom_call.1} parent=0
    _
  %s5 = ssub.s32 1, %s3
  %s6 = scalar_select 0, %s5, %s3
  $region1: #{tpu_custom_call.1} parent=0
    #allocation2 [shape = 'u8[65536]{0}', space=vmem, size = 0x10000, scoped, tag = 'input window, operand 0']
    #allocation3 [shape = 's32[2]{0}', space=sflag, size = 0x8, scoped, tag = 'scoped memory for tpu_custom_call.1']
    #allocation4 [shape = 's32[2]{0}', space=sflag, size = 0x8, scoped, tag = 'scoped memory for tpu_custom_call.1']
    #allocation5 [shape = 's32[2]{0}', space=sflag, size = 0x8, scoped, tag = 'scoped memory for tpu_custom_call.1']
    #allocation6 [shape = 'u8[2048]{0}', space=smem, size = 0x800, scoped, tag = 'input window, operand 1, single buffered']
    #allocation7 [shape = 'u8[4096]{0}', space=vmem, size = 0x1000, scoped, tag = 'output window, operand 0']
    %7 = vsyncpa [#allocation3], 0
    %s8 = scalar_lea.sflag [#allocation3], 1
    %9 = vsyncpa %s8, 0
    %10 = vsyncpa [#allocation5], 0
    %11 = vsyncpa [#allocation4], 0
    %s12 = scalar_lea.sflag [#allocation4], 1
    %13 = vsyncpa %s12, 0
    loop: start=0, step=1, limit=4
    $region2: #{tpu_custom_call.1} parent=1 // loop_pre_header
      _
    $region3: #{tpu_custom_call.1} parent=1 // loop_header
      %s15 = sphi 0, %s19
      %p16 = scmp.ge.s32.totalorder %s15, 4
      %s22 = sphi 0, %s34
      %s23 = sphi 0, %s30
      %s24 = sphi 0, %s22
      %s25 = sphi 0, %s23
      %s26 = sphi 0, %s24
      %s27 = sphi 0, %s25
      %s39 = sphi 0, %s41
      %s42 = sphi 0, %s39
      %s43 = sphi 0, %s42
      %s59 = sphi 0, %s43
      %s63 = sphi 0, %s63
      %s65 = sphi 0, %s63
      %s66 = sphi 0, %s65
      %s80 = sphi 0, %s66
      %s88 = sphi 0, %s90
      %s91 = sphi 0, %s88
      %s92 = sphi 0, %s91
      %s108 = sphi 0, %s92
    $region4: #{tpu_custom_call.1} parent=1 // loop_header_branch
      %18 = sbr.rel (%p16) target = $region8
    $region5: #{tpu_custom_call.1} parent=1 // loop_body
      %s20 = ssub.s32 %s15, 1
      %s21 = ssub.s32 %s15, 2
      %s28 = sadd.s32 1, %s23
      %p29 = scmp.ge.s32.totalorder %s28, 1
      %s30 = scalar_select %p29, 0, %s28
      %s31 = sadd.s32 1, %s22
      %s32 = scalar_select %p29, %s31, %s22
      %p33 = scmp.ge.s32.totalorder %s32, 2
      %s34 = scalar_select %p33, 0, %s32
      %s35 = ssub.s32 %s22, %s34
      %s36 = ssub.s32 %s23, %s30
      %s37 = sor.u32 %s35, %s36
      %p38 = scmp.eq.s32.totalorder %s37, 0
      %s40 = sadd.s32 %s39, 1
      %s41 = scalar_select %p38, %s39, %s40
      %p44 = pneg %p38
      %p45 = scmp.eq.s32.totalorder %s15, 1
      %p46 = por %p44, %p45
      %p47 = scmp.ne.s32.totalorder %s39, %s42
      %p48 = scmp.eq.s32.totalorder %s15, 0
      %p49 = por %p47, %p48
      %p50 = scmp.ne.s32.totalorder %s39, %s42
      %p51 = scmp.eq.s32.totalorder %s20, 1
      %p52 = por %p50, %p51
      %p53 = scmp.ne.s32.totalorder %s42, %s43
      %p54 = scmp.eq.s32.totalorder %s20, 0
      %p55 = por %p53, %p54
      %p56 = scmp.ne.s32.totalorder %s42, %s43
      %p57 = scmp.eq.s32.totalorder %s21, 1
      %p58 = por %p56, %p57
      %p60 = scmp.ne.s32.totalorder %s43, %s59
      %p61 = scmp.eq.s32.totalorder %s21, 0
      %p62 = por %p60, %p61
      %s64 = sadd.s32 %s63, 1
      %p67 = scmp.eq.s32.totalorder %s15, 1
      %p68 = scmp.ne.s32.totalorder %s63, %s65
      %p69 = scmp.eq.s32.totalorder %s15, 0
      %p70 = por %p68, %p69
      %p71 = scmp.ne.s32.totalorder %s63, %s65
      %p72 = scmp.eq.s32.totalorder %s20, 1
      %p73 = por %p71, %p72
      %p74 = scmp.ne.s32.totalorder %s65, %s66
      %p75 = scmp.eq.s32.totalorder %s20, 0
      %p76 = por %p74, %p75
      %p77 = scmp.ne.s32.totalorder %s65, %s66
      %p78 = scmp.eq.s32.totalorder %s21, 1
      %p79 = por %p77, %p78
      %p81 = scmp.ne.s32.totalorder %s66, %s80
      %p82 = scmp.eq.s32.totalorder %s21, 0
      %p83 = por %p81, %p82
      %s84 = ssub.s32 %s22, %s34
      %s85 = ssub.s32 %s23, %s30
      %s86 = sor.u32 %s84, %s85
      %p87 = scmp.eq.s32.totalorder %s86, 0
      %s89 = sadd.s32 %s88, 1
      %s90 = scalar_select %p87, %s88, %s89
      %p93 = pneg %p87
      %p94 = scmp.eq.s32.totalorder %s15, 1
      %p95 = por %p93, %p94
      %p96 = scmp.ne.s32.totalorder %s88, %s91
      %p97 = scmp.eq.s32.totalorder %s15, 0
      %p98 = por %p96, %p97
      %p99 = scmp.ne.s32.totalorder %s88, %s91
      %p100 = scmp.eq.s32.totalorder %s20, 1
      %p101 = por %p99, %p100
      %p102 = scmp.ne.s32.totalorder %s91, %s92
      %p103 = scmp.eq.s32.totalorder %s20, 0
      %p104 = por %p102, %p103
      %p105 = scmp.ne.s32.totalorder %s91, %s92
      %p106 = scmp.eq.s32.totalorder %s21, 1
      %p107 = por %p105, %p106
      %p109 = scmp.ne.s32.totalorder %s92, %s108
      %p110 = scmp.eq.s32.totalorder %s21, 0
      %p111 = por %p109, %p110
      %p112 = scmp.le.s32.totalorder 1, %s15
      %p113 = scmp.lt.s32.totalorder %s15, 3
      %p114 = pnand %p112, %p113
      %p115 = pneg %p114
      // Predicated region
      $region9: #{tpu_custom_call.1} parent=5 // pred_check
        _
      $region10: #{tpu_custom_call.1} parent=5 // pred_check_branch
        %117 = sbr.rel (%p114) target = $region12
      $region11: #{tpu_custom_call.1} parent=5 // pred_region
        %s118 = ssub.s32 %s15, 1
        // Predicated region
        $region13: #{tpu_custom_call.1} parent=11 // pred_check
          %p119 = pneg %p76
        $region14: #{tpu_custom_call.1} parent=11 // pred_check_branch
          %121 = sbr.rel (%p119) target = $region16
        $region15: #{tpu_custom_call.1} parent=11 // pred_region
          %s123 = ssub.s32 64, 64
          %124 = vsyncadd [#allocation5], %s123
          %127 = dma.hbm_to_smem %s1, 64, [#allocation6], [#allocation5]
        $region16: #{tpu_custom_call.1} parent=11 // pred_fallthru
          _
      $region12: #{tpu_custom_call.1} parent=5 // pred_fallthru
        _
      %p128 = scmp.lt.s32.totalorder %s15, 2
      // Predicated region
      $region17: #{tpu_custom_call.1} parent=5 // pred_check
        %p129 = pneg %p128
      $region18: #{tpu_custom_call.1} parent=5 // pred_check_branch
        %131 = sbr.rel (%p129) target = $region20
      $region19: #{tpu_custom_call.1} parent=5 // pred_region
        // Predicated region
        $region21: #{tpu_custom_call.1} parent=19 // pred_check
          %p132 = pneg %p49
        $region22: #{tpu_custom_call.1} parent=19 // pred_check_branch
          %134 = sbr.rel (%p132) target = $region24
        $region23: #{tpu_custom_call.1} parent=19 // pred_region
          %s135 = sand.u32 %s39, 1
          %s136 = scalar_lea.sflag [#allocation3], %s135
          %s137 = sand.u32 %s39, 1
          %s138 = smul.addr %s137, 64
          %s139 = scalar_lea.vmem [#allocation2], %s138
          %s140 = smul.u32 2, %s23
          %s142 = ssub.s32 1024, 1024
          %143 = vsyncadd %s136, %s142
          %s144 = smul.addr %s22, 8
          %s145 = sadd.s32 %s140, %s144
          %s146 = smul.addr %s145, 128
          %s147 = scalar_lea.hbm %s0, %s146
          %s148 = sshll.u32 %s139, 4
          %s149 = int_to_ptr.vmem [resolvable:$true] %s148
          %154 = dma.hbm_to_vmem [thread:$0]  %s147, 1024, %s149, %s136, 128, 128, 8
        $region24: #{tpu_custom_call.1} parent=19 // pred_fallthru
          _
      $region20: #{tpu_custom_call.1} parent=5 // pred_fallthru
        _
      %p155 = scmp.le.s32.totalorder 1, %s15
      %p156 = scmp.lt.s32.totalorder %s15, 3
      %p157 = pnand %p155, %p156
      %p158 = pneg %p157
      // Predicated region
      $region25: #{tpu_custom_call.1} parent=5 // pred_check
        _
      $region26: #{tpu_custom_call.1} parent=5 // pred_check_branch
        %160 = sbr.rel (%p157) target = $region28
      $region27: #{tpu_custom_call.1} parent=5 // pred_region
        %s161 = ssub.s32 %s15, 1
        %s162 = sand.u32 %s42, 1
        %s163 = scalar_lea.sflag [#allocation3], %s162
        %s164 = sand.u32 %s42, 1
        %s165 = smul.addr %s164, 64
        %s166 = scalar_lea.vmem [#allocation2], %s165
        // Predicated region
        $region29: #{tpu_custom_call.1} parent=27 // pred_check
          %p167 = pneg %p55
        $region30: #{tpu_custom_call.1} parent=27 // pred_check_branch
          %169 = sbr.rel (%p167) target = $region32
        $region31: #{tpu_custom_call.1} parent=27 // pred_region
          %170 = dma.done %s163, 1024
        $region32: #{tpu_custom_call.1} parent=27 // pred_fallthru
          _
        // Predicated region
        $region33: #{tpu_custom_call.1} parent=27 // pred_check
          %p171 = pneg %p76
        $region34: #{tpu_custom_call.1} parent=27 // pred_check_branch
          %173 = sbr.rel (%p171) target = $region36
        $region35: #{tpu_custom_call.1} parent=27 // pred_region
          %174 = dma.done [#allocation5], 64
        $region36: #{tpu_custom_call.1} parent=27 // pred_fallthru
          _
        %175 = sfence
        %s176 = sand.u32 %s42, 1
        %s177 = scalar_lea.sflag [#allocation3], %s176
        %s178 = sand.u32 %s42, 1
        %s179 = smul.addr %s178, 64
        %s180 = scalar_lea.vmem [#allocation2], %s179
        %p181 = pneg %p55
        %p182 = pneg %p52
        %p183 = pneg %p76
        %p184 = pneg %p73
        %p185 = pneg %p104
        %p186 = pneg %p101
        %s187 = sand.u32 %s91, 1
        %s188 = scalar_lea.sflag [#allocation4], %s187
        %s189 = sand.u32 %s91, 1
        %s190 = smul.addr %s189, 4
        %s191 = scalar_lea.vmem [#allocation7], %s190
        %s192 = smul.u32 2, %s25
        %v193 = vld [vmem:[%s166] sm:$0xff]
        %v194 = vld [vmem:[%s166 + $0x8] sm:$0xff]
        %v195 = vld [vmem:[%s166 + $0x10] sm:$0xff]
        %v196 = vld [vmem:[%s166 + $0x18] sm:$0xff]
        %v197 = vld [vmem:[%s166 + $0x20] sm:$0xff]
        %v198 = vld [vmem:[%s166 + $0x28] sm:$0xff]
        %v199 = vld [vmem:[%s166 + $0x30] sm:$0xff]
        %v200 = vld [vmem:[%s166 + $0x38] sm:$0xff]
        %s201 = sld [smem:[#allocation6]]
        %v202 = vstv %s201
        %v203 = vmul.f32 %v202, %v193
        %v204 = vmul.f32 %v202, %v194
        %s205 = sld [smem:[#allocation6 + $0x1]]
        %v206 = vstv %s205
        %v207 = vmul.f32 %v206, %v195
        %v208 = vmul.f32 %v206, %v196
        %v209 = vadd.f32 %v203, %v207
        %v210 = vadd.f32 %v204, %v208
        %s211 = sld [smem:[#allocation6 + $0x2]]
        %v212 = vstv %s211
        %v213 = vmul.f32 %v212, %v197
        %v214 = vmul.f32 %v212, %v198
        %v215 = vadd.f32 %v209, %v213
        %v216 = vadd.f32 %v210, %v214
        %s217 = sld [smem:[#allocation6 + $0x3]]
        %v218 = vstv %s217
        %v219 = vmul.f32 %v218, %v199
        %v220 = vmul.f32 %v218, %v200
        %v221 = vadd.f32 %v215, %v219
        %v222 = vadd.f32 %v216, %v220
        %s223 = sld [smem:[#allocation6 + $0x80]]
        %v224 = vstv %s223
        %v225 = vmul.f32 %v224, %v193
        %v226 = vmul.f32 %v224, %v194
        %s227 = sld [smem:[#allocation6 + $0x81]]
        %v228 = vstv %s227
        %v229 = vmul.f32 %v228, %v195
        %v230 = vmul.f32 %v228, %v196
        %v231 = vadd.f32 %v225, %v229
        %v232 = vadd.f32 %v226, %v230
        %s233 = sld [smem:[#allocation6 + $0x82]]
        %v234 = vstv %s233
        %v235 = vmul.f32 %v234, %v197
        %v236 = vmul.f32 %v234, %v198
        %v237 = vadd.f32 %v231, %v235
        %v238 = vadd.f32 %v232, %v236
        %s239 = sld [smem:[#allocation6 + $0x83]]
        %v240 = vstv %s239
        %v241 = vmul.f32 %v240, %v199
        %v242 = vmul.f32 %v240, %v200
        %v243 = vadd.f32 %v237, %v241
        %v244 = vadd.f32 %v238, %v242
        %s245 = sld [smem:[#allocation6 + $0x100]]
        %v246 = vstv %s245
        %v247 = vmul.f32 %v246, %v193
        %v248 = vmul.f32 %v246, %v194
        %s249 = sld [smem:[#allocation6 + $0x101]]
        %v250 = vstv %s249
        %v251 = vmul.f32 %v250, %v195
        %v252 = vmul.f32 %v250, %v196
        %v253 = vadd.f32 %v247, %v251
        %v254 = vadd.f32 %v248, %v252
        %s255 = sld [smem:[#allocation6 + $0x102]]
        %v256 = vstv %s255
        %v257 = vmul.f32 %v256, %v197
        %v258 = vmul.f32 %v256, %v198
        %v259 = vadd.f32 %v253, %v257
        %v260 = vadd.f32 %v254, %v258
        %s261 = sld [smem:[#allocation6 + $0x103]]
        %v262 = vstv %s261
        %v263 = vmul.f32 %v262, %v199
        %v264 = vmul.f32 %v262, %v200
        %v265 = vadd.f32 %v259, %v263
        %v266 = vadd.f32 %v260, %v264
        %s267 = sld [smem:[#allocation6 + $0x180]]
        %v268 = vstv %s267
        %v269 = vmul.f32 %v268, %v193
        %v270 = vmul.f32 %v268, %v194
        %s271 = sld [smem:[#allocation6 + $0x181]]
        %v272 = vstv %s271
        %v273 = vmul.f32 %v272, %v195
        %v274 = vmul.f32 %v272, %v196
        %v275 = vadd.f32 %v269, %v273
        %v276 = vadd.f32 %v270, %v274
        %s277 = sld [smem:[#allocation6 + $0x182]]
        %v278 = vstv %s277
        %v279 = vmul.f32 %v278, %v197
        %v280 = vmul.f32 %v278, %v198
        %v281 = vadd.f32 %v275, %v279
        %v282 = vadd.f32 %v276, %v280
        %s283 = sld [smem:[#allocation6 + $0x183]]
        %v284 = vstv %s283
        %v285 = vmul.f32 %v284, %v199
        %v286 = vmul.f32 %v284, %v200
        %v287 = vadd.f32 %v281, %v285
        %v288 = vadd.f32 %v282, %v286
        %vm289 = vcmask 130048
        %v290 = vsel %vm289, %v221, -inf
        %291 = vmax.xlane.f32.xlu0 %v290
        %v292 = vpop.xlane.xlu0 %291
        %v293 = vsel %vm289, %v222, -inf
        %294 = vmax.xlane.f32.xlu0 %v293
        %v295 = vpop.xlane.xlu0 %294
        %v296 = vsel %vm289, %v243, -inf
        %297 = vmax.xlane.f32.xlu0 %v296
        %v298 = vpop.xlane.xlu0 %297
        %v299 = vsel %vm289, %v244, -inf
        %300 = vmax.xlane.f32.xlu0 %v299
        %v301 = vpop.xlane.xlu0 %300
        %v302 = vsel %vm289, %v265, -inf
        %303 = vmax.xlane.f32.xlu0 %v302
        %v304 = vpop.xlane.xlu0 %303
        %v305 = vsel %vm289, %v266, -inf
        %306 = vmax.xlane.f32.xlu0 %v305
        %v307 = vpop.xlane.xlu0 %306
        %v308 = vsel %vm289, %v287, -inf
        %309 = vmax.xlane.f32.xlu0 %v308
        %v310 = vpop.xlane.xlu0 %309
        %v311 = vsel %vm289, %v288, -inf
        %312 = vmax.xlane.f32.xlu0 %v311
        %v313 = vpop.xlane.xlu0 %312
        %v314 = vsub.f32 %v221, %v292
        %v315 = vsub.f32 %v222, %v295
        %v316 = vsub.f32 %v243, %v298
        %v317 = vsub.f32 %v244, %v301
        %v318 = vsub.f32 %v265, %v304
        %v319 = vsub.f32 %v266, %v307
        %v320 = vsub.f32 %v287, %v310
        %v321 = vsub.f32 %v288, %v313
        %v322 = vmul.f32 %v314, 1.442695
        %v323 = vpow.pop %v322
        %v324 = vmul.f32 %v315, 1.442695
        %v325 = vpow.pop %v324
        %v326 = vmul.f32 %v316, 1.442695
        %v327 = vpow.pop %v326
        %v328 = vmul.f32 %v317, 1.442695
        %v329 = vpow.pop %v328
        %v330 = vmul.f32 %v318, 1.442695
        %v331 = vpow.pop %v330
        %v332 = vmul.f32 %v319, 1.442695
        %v333 = vpow.pop %v332
        %v334 = vmul.f32 %v320, 1.442695
        %v335 = vpow.pop %v334
        %v336 = vmul.f32 %v321, 1.442695
        %v337 = vpow.pop %v336
        %v338 = vsel %vm289, %v323, 0.0
        %339 = vadd.xlane.f32.xlu0 %v338
        %v340 = vpop.xlane.xlu0 %339
        %v341 = vsel %vm289, %v325, 0.0
        %342 = vadd.xlane.f32.xlu0 %v341
        %v343 = vpop.xlane.xlu0 %342
        %v344 = vsel %vm289, %v327, 0.0
        %345 = vadd.xlane.f32.xlu0 %v344
        %v346 = vpop.xlane.xlu0 %345
        %v347 = vsel %vm289, %v329, 0.0
        %348 = vadd.xlane.f32.xlu0 %v347
        %v349 = vpop.xlane.xlu0 %348
        %v350 = vsel %vm289, %v331, 0.0
        %351 = vadd.xlane.f32.xlu0 %v350
        %v352 = vpop.xlane.xlu0 %351
        %v353 = vsel %vm289, %v333, 0.0
        %354 = vadd.xlane.f32.xlu0 %v353
        %v355 = vpop.xlane.xlu0 %354
        %v356 = vsel %vm289, %v335, 0.0
        %357 = vadd.xlane.f32.xlu0 %v356
        %v358 = vpop.xlane.xlu0 %357
        %v359 = vsel %vm289, %v337, 0.0
        %360 = vadd.xlane.f32.xlu0 %v359
        %v361 = vpop.xlane.xlu0 %360
        %v362 = vmul.f32 %v193, %v323
        %v363 = vmul.f32 %v194, %v325
        %v364 = vmul.f32 %v195, %v327
        %v365 = vmul.f32 %v196, %v329
        %v366 = vmul.f32 %v197, %v331
        %v367 = vmul.f32 %v198, %v333
        %v368 = vmul.f32 %v199, %v335
        %v369 = vmul.f32 %v200, %v337
        %v370 = vsel %vm289, %v362, 0.0
        %371 = vadd.xlane.f32.xlu0 %v370
        %v372 = vpop.xlane.xlu0 %371
        %v373 = vsel %vm289, %v363, 0.0
        %374 = vadd.xlane.f32.xlu0 %v373
        %v375 = vpop.xlane.xlu0 %374
        %v376 = vsel %vm289, %v364, 0.0
        %377 = vadd.xlane.f32.xlu0 %v376
        %v378 = vpop.xlane.xlu0 %377
        %v379 = vsel %vm289, %v365, 0.0
        %380 = vadd.xlane.f32.xlu0 %v379
        %v381 = vpop.xlane.xlu0 %380
        %v382 = vsel %vm289, %v366, 0.0
        %383 = vadd.xlane.f32.xlu0 %v382
        %v384 = vpop.xlane.xlu0 %383
        %v385 = vsel %vm289, %v367, 0.0
        %386 = vadd.xlane.f32.xlu0 %v385
        %v387 = vpop.xlane.xlu0 %386
        %v388 = vsel %vm289, %v368, 0.0
        %389 = vadd.xlane.f32.xlu0 %v388
        %v390 = vpop.xlane.xlu0 %389
        %v391 = vsel %vm289, %v369, 0.0
        %392 = vadd.xlane.f32.xlu0 %v391
        %v393 = vpop.xlane.xlu0 %392
        %v394 = vrcp.pop %v340
        %v395 = vmul.f32 %v372, %v394
        %v396 = vrcp.pop %v343
        %v397 = vmul.f32 %v375, %v396
        %v398 = vrcp.pop %v346
        %v399 = vmul.f32 %v378, %v398
        %v400 = vrcp.pop %v349
        %v401 = vmul.f32 %v381, %v400
        %v402 = vrcp.pop %v352
        %v403 = vmul.f32 %v384, %v402
        %v404 = vrcp.pop %v355
        %v405 = vmul.f32 %v387, %v404
        %v406 = vrcp.pop %v358
        %v407 = vmul.f32 %v390, %v406
        %v408 = vrcp.pop %v361
        %v409 = vmul.f32 %v393, %v408
        %v418 = vlaneseq
        %v419 = vand.u32 %v418, 127
        %v420 = vlaneseq
        %v421 = vshrl.u32 %v420, 7
        %v422 = vsub.s32 %v419, %v421
        %v423 = vrot.slane %v395, %v422
        %v424 = vadd.s32 %v419, 4294967288
        %v425 = vlaneseq
        %v426 = vshrl.u32 %v425, 7
        %v427 = vsub.s32 %v424, %v426
        %v428 = vrot.slane %v397, %v427
        %vm429 = vcmask 130112
        %v430 = vsel %vm429, %v428, %v423
        %v431 = vlaneseq
        %v432 = vshrl.u32 %v431, 7
        %v433 = vsub.s32 %v419, %v432
        %v434 = vrot.slane %v399, %v433
        %v435 = vlaneseq
        %v436 = vshrl.u32 %v435, 7
        %v437 = vsub.s32 %v424, %v436
        %v438 = vrot.slane %v401, %v437
        %v439 = vsel %vm429, %v438, %v434
        %v440 = vlaneseq
        %v441 = vshrl.u32 %v440, 7
        %v442 = vsub.s32 %v419, %v441
        %v443 = vrot.slane %v403, %v442
        %v444 = vlaneseq
        %v445 = vshrl.u32 %v444, 7
        %v446 = vsub.s32 %v424, %v445
        %v447 = vrot.slane %v405, %v446
        %v448 = vsel %vm429, %v447, %v443
        %v449 = vlaneseq
        %v450 = vshrl.u32 %v449, 7
        %v451 = vsub.s32 %v419, %v450
        %v452 = vrot.slane %v407, %v451
        %v453 = vlaneseq
        %v454 = vshrl.u32 %v453, 7
        %v455 = vsub.s32 %v424, %v454
        %v456 = vrot.slane %v409, %v455
        %v457 = vsel %vm429, %v456, %v452
        %vm458 = vcmask 1041409
        %v459 = vsel %vm458, %v439, %v430
        %vm460 = vcmask 1042434
        %v461 = vsel %vm460, %v448, %v459
        %vm462 = vcmask 1043459
        %v463 = vsel %vm462, %v457, %v461
        %vm465 = vcmask 125952
        %466 = vst.msk [vmem:[%s191] sm:$0xf] %vm465, %v463
        %s467 = sand.u32 %s91, 1
        %s468 = scalar_lea.sflag [#allocation4], %s467
        %s469 = sand.u32 %s91, 1
        %s470 = smul.addr %s469, 4
        %s471 = scalar_lea.vmem [#allocation7], %s470
        // Predicated region
        $region37: #{tpu_custom_call.1} parent=27 // pred_check
          %p472 = pneg %p101
        $region38: #{tpu_custom_call.1} parent=27 // pred_check_branch
          %474 = sbr.rel (%p472) target = $region40
        $region39: #{tpu_custom_call.1} parent=27 // pred_region
          %s476 = ssub.s32 64, 64
          %477 = vsyncadd %s468, %s476
          %s478 = sadd.s32 %s25, %s24
          %s479 = smul.addr %s478, 64
          %s480 = scalar_lea.hbm %s2, %s479
          %s482 = sshll.u32 %s471, 4
          %s483 = int_to_ptr.vmem [resolvable:$true] %s482
          %485 = dma.vmem_to_hbm [thread:$0]  %s483, 64, %s480, %s468
        $region40: #{tpu_custom_call.1} parent=27 // pred_fallthru
          _
      $region28: #{tpu_custom_call.1} parent=5 // pred_fallthru
        _
      %p486 = scmp.le.s32.totalorder 2, %s15
      // Predicated region
      $region41: #{tpu_custom_call.1} parent=5 // pred_check
        %p487 = pneg %p486
      $region42: #{tpu_custom_call.1} parent=5 // pred_check_branch
        %489 = sbr.rel (%p487) target = $region44
      $region43: #{tpu_custom_call.1} parent=5 // pred_region
        %s490 = ssub.s32 %s15, 2
        // Predicated region
        $region45: #{tpu_custom_call.1} parent=43 // pred_check
          %p491 = pneg %p107
        $region46: #{tpu_custom_call.1} parent=43 // pred_check_branch
          %493 = sbr.rel (%p491) target = $region48
        $region47: #{tpu_custom_call.1} parent=43 // pred_region
          %s494 = sand.u32 %s92, 1
          %s495 = scalar_lea.sflag [#allocation4], %s494
          %s496 = sand.u32 %s92, 1
          %s497 = smul.addr %s496, 4
          %s498 = scalar_lea.vmem [#allocation7], %s497
          %499 = dma.done %s495, 64
        $region48: #{tpu_custom_call.1} parent=43 // pred_fallthru
          _
      $region44: #{tpu_custom_call.1} parent=5 // pred_fallthru
        _
    $region6: #{tpu_custom_call.1} parent=1 // loop_footer
      %s19 = sadd.s32 1, %s15
    $region7: #{tpu_custom_call.1} parent=1 // loop_footer_branch
      %14 = sbr.rel target = $region3
    $region8: #{tpu_custom_call.1} parent=1 // loop_exit
      _
    %500 = vsyncpa [#allocation3], 1
    %s501 = scalar_lea.sflag [#allocation3], 1
    %502 = vsyncpa %s501, 1
    %503 = vsyncpa [#allocation4], 1
    %s504 = scalar_lea.sflag [#allocation4], 1
    %505 = vsyncpa %s504, 1
    %506 = vsyncpa [#allocation5], 1
    %s507 = scalar_lea.sflag [#allocation5], 1
    %508 = vsyncpa %s507, 1

</llo_original>
